<compile_context>
chip_gen: v5e
topology: v5e:2x2
jax: 0.10.0
libtpu: 0.0.40
codegen_flags: <defaults>
</compile_context>

<pallas_src>
import functools

import jax
import jax.numpy as jnp
from jax.experimental import pallas as pl
from jax.experimental.pallas import tpu as pltpu


_LANE = 128
_SUBLANE = 8
_TARGET_VMEM = 28 * 1024 * 1024   # working-set target (conservative, all gens)
_VMEM_LIMIT = 48 * 1024 * 1024    # scoped-VMEM request (< v7x 64 MiB physical)


def _round_up(x, m):
    return ((x + m - 1) // m) * m


# ----------------------------- kernels --------------------------------------

def _resident_kernel(x_ref, w_ref, b_ref, o_ref):
    """W-resident single-K-step GEMM: o = x @ w + b (no accumulator scratch)."""
    # x_ref: (tm, K), w_ref: (K, N_pad) resident, b_ref: (1, N_pad), o_ref: (tm, N_pad)
    acc = jnp.dot(x_ref[...], w_ref[...], preferred_element_type=jnp.float32)
    o_ref[...] = (acc + b_ref[...].astype(jnp.float32)).astype(o_ref.dtype)
    # TODO(synk): nn.Dropout(head_dropout) is identity for head_dropout=0 /
    # eval mode; training-mode dropout would use pltpu.prng_random_bits here.


def _tiled_kernel(x_ref, w_ref, b_ref, o_ref, acc_ref):
    """Output-stationary GEMM, K reduction in an f32 VMEM accumulator."""
    k = pl.program_id(2)

    @pl.when(k == 0)
    def _():
        acc_ref[...] = jnp.zeros_like(acc_ref)

    acc_ref[...] += jnp.dot(x_ref[...], w_ref[...],
                            preferred_element_type=jnp.float32)

    @pl.when(k == pl.num_programs(2) - 1)
    def _():
        o_ref[...] = (acc_ref[...] + b_ref[...].astype(jnp.float32)
                      ).astype(o_ref.dtype)


# ----------------------------- tiling helpers --------------------------------

def _pick_tm_resident(M, K, N_pad, cbytes, obytes, max_tm=512):
    """Biggest row-tile (multiple of 8) whose double-buffered X/out slabs fit
    next to the resident W within the VMEM budget."""
    w_bytes = 2 * K * N_pad * cbytes + 2 * N_pad * 4          # W + bias
    per_row = 2 * (K * cbytes + N_pad * obytes)               # X + out per row
    cap = max(_SUBLANE, (_TARGET_VMEM - w_bytes) // max(per_row, 1))
    tm = min(max_tm, int(cap))
    tm = max(_SUBLANE, (tm // _SUBLANE) * _SUBLANE)
    tm = min(tm, _round_up(M, _SUBLANE))
    # Give the v7x megacore at least 2 grid steps when there is enough work.
    if M >= 2 * _SUBLANE and _round_up(M, tm) // tm < 2:
        tm = _round_up((M + 1) // 2, _SUBLANE)
    return tm


def _pick_tiles_fallback(M, K_pad, N_pad, tm=None, tn=None, tk=None):
    if tn is None:
        tn = _LANE
        for cand in (512, 384, 256, 128):
            if N_pad % cand == 0:
                tn = cand
                break
    if tk is None:
        tk = _LANE
        for cand in range(min(1024, K_pad), _LANE - 1, -_LANE):
            if K_pad % cand == 0:
                tk = cand
                break
    if tm is None:
        tm = min(256, _round_up(M, _SUBLANE))
    return tm, tn, tk


# ----------------------------- entry point -----------------------------------

@functools.partial(jax.jit, static_argnames=("compute_dtype", "force_tiled",
                                             "tm", "tn", "tk"))
def flatten_head_forward(x, weight, bias, *, compute_dtype=None,
                         force_tiled=False, tm=None, tn=None, tk=None):
    """Flatten(start_dim=-2) + Linear(seq_len*d_model, pred_len) forward.

    x      : [..., seq_len, d_model]
    weight : [pred_len, seq_len*d_model]  (PyTorch nn.Linear layout)
    bias   : [pred_len]
    compute_dtype: optional (e.g. "bfloat16") — cast X/W in the wrapper to cut
                   HBM traffic; accumulation stays f32, output keeps x.dtype.
    """
    *lead, seq_len, d_model = x.shape
    K = seq_len * d_model
    N = weight.shape[0]
    M = 1
    for d in lead:
        M *= d

    out_dtype = x.dtype
    cdtype = jnp.dtype(compute_dtype) if compute_dtype is not None else jnp.dtype(out_dtype)
    cbytes = cdtype.itemsize
    obytes = jnp.dtype(out_dtype).itemsize

    # One-time wrapper-side prep (in a real model keep W stored this way):
    x2d = x.reshape(M, K).astype(cdtype)
    w_t = weight.T.astype(cdtype)                 # [K, N]  (NN matmul in-kernel)
    N_pad = _round_up(N, _LANE)                   # lane-dense, unmasked stores
    if N_pad != N:
        w_t = jnp.pad(w_t, ((0, 0), (0, N_pad - N)))
        b_p = jnp.pad(bias, (0, N_pad - N))
    else:
        b_p = bias
    b2d = b_p.reshape(1, N_pad).astype(jnp.float32)

    user_tiled = force_tiled or (tm is not None) or (tn is not None) or (tk is not None)

    # ---------- Path A: W resident in VMEM, X streamed exactly once ----------
    w_resident_bytes = 2 * K * N_pad * cbytes
    min_per_row = 2 * (K * cbytes + N_pad * obytes)
    resident_ok = (not user_tiled) and (
        w_resident_bytes + _SUBLANE * min_per_row + 2 * N_pad * 4 <= _TARGET_VMEM)

    if resident_ok:
        a_tm = _pick_tm_resident(M, K, N_pad, cbytes, obytes)
        M_pad = _round_up(M, a_tm)
        if M_pad != M:
            x2d = jnp.pad(x2d, ((0, M_pad - M), (0, 0)))
        grid = (M_pad // a_tm,)

        bytes_accessed = (M_pad * K * cbytes        # X streamed once
                          + K * N_pad * cbytes      # W fetched once (resident)
                          + N_pad * 4               # bias
                          + M_pad * N_pad * obytes)  # output
        out = pl.pallas_call(
            _resident_kernel,
            out_shape=jax.ShapeDtypeStruct((M_pad, N_pad), out_dtype),
            grid_spec=pltpu.PrefetchScalarGridSpec(
                num_scalar_prefetch=0,
                grid=grid,
                in_specs=[
                    pl.BlockSpec((a_tm, K), lambda i: (i, 0)),    # X row slab
                    pl.BlockSpec((K, N_pad), lambda i: (0, 0)),   # W, constant idx
                    pl.BlockSpec((1, N_pad), lambda i: (0, 0)),   # bias
                ],
                out_specs=pl.BlockSpec((a_tm, N_pad), lambda i: (i, 0)),
            ),
            compiler_params=pltpu.CompilerParams(
                dimension_semantics=("parallel",),
                vmem_limit_bytes=_VMEM_LIMIT,
            ),
            cost_estimate=pl.CostEstimate(
                flops=2 * M_pad * K * N_pad,
                transcendentals=0,
                bytes_accessed=bytes_accessed,
            ),
        )(x2d, w_t, b2d)
        return out[:M, :N].reshape(*lead, N)

    # ---------- Path B: tiled output-stationary fallback ---------------------
    K_pad = _round_up(K, _LANE)
    if K_pad != K:
        x2d = jnp.pad(x2d, ((0, 0), (0, K_pad - K)))
        w_t = jnp.pad(w_t, ((0, K_pad - K), (0, 0)))

    b_tm, b_tn, b_tk = _pick_tiles_fallback(M, K_pad, N_pad, tm=tm, tn=tn, tk=tk)
    if N_pad % b_tn != 0:
        raise ValueError(f"tn={b_tn} must divide padded N={N_pad}")
    if K_pad % b_tk != 0:
        raise ValueError(f"tk={b_tk} must divide padded K={K_pad}")
    M_pad = _round_up(M, b_tm)
    if M_pad != M:
        x2d = jnp.pad(x2d, ((0, M_pad - M), (0, 0)))

    grid = (M_pad // b_tm, N_pad // b_tn, K_pad // b_tk)
    # Honest traffic estimate including the re-streaming across i / j axes.
    bytes_accessed = (grid[1] * M_pad * K_pad * cbytes
                      + grid[0] * K_pad * N_pad * cbytes
                      + grid[0] * N_pad * 4
                      + M_pad * N_pad * obytes)

    out = pl.pallas_call(
        _tiled_kernel,
        out_shape=jax.ShapeDtypeStruct((M_pad, N_pad), out_dtype),
        grid_spec=pltpu.PrefetchScalarGridSpec(
            num_scalar_prefetch=0,
            grid=grid,
            in_specs=[
                pl.BlockSpec((b_tm, b_tk), lambda i, j, k: (i, k)),   # X tile
                pl.BlockSpec((b_tk, b_tn), lambda i, j, k: (k, j)),   # W [K,N] tile
                pl.BlockSpec((1, b_tn), lambda i, j, k: (0, j)),      # bias tile
            ],
            out_specs=pl.BlockSpec((b_tm, b_tn), lambda i, j, k: (i, j)),
            scratch_shapes=[pltpu.VMEM((b_tm, b_tn), jnp.float32)],
        ),
        compiler_params=pltpu.CompilerParams(
            dimension_semantics=("parallel", "parallel", "arbitrary"),
            vmem_limit_bytes=_VMEM_LIMIT,
        ),
        cost_estimate=pl.CostEstimate(
            flops=2 * M_pad * K_pad * N_pad,
            transcendentals=0,
            bytes_accessed=bytes_accessed,
        ),
    )(x2d, w_t, b2d)
    return out[:M, :N].reshape(*lead, N)


if __name__ == "__main__":
    # Small shapes consistent with the module: x = [batch, n_vars, seq_len, d_model].
    # pred_len=96 (a typical non-128-multiple horizon) exercises the N-padding path.
    batch, n_vars, seq_len, d_model, pred_len = 2, 4, 16, 32, 96

    key = jax.random.PRNGKey(0)
    kx, kw, kb = jax.random.split(key, 3)

    x = jax.random.normal(kx, (batch, n_vars, seq_len, d_model), dtype=jnp.float32)

    fan_in = seq_len * d_model
    bound = 1.0 / (fan_in ** 0.5)
    weight = jax.random.uniform(kw, (pred_len, fan_in), jnp.float32, -bound, bound)
    bias = jax.random.uniform(kb, (pred_len,), jnp.float32, -bound, bound)

    # Reference (same math as the PyTorch module; dropout p=0 -> identity).
    ref = x.reshape(batch, n_vars, fan_in) @ weight.T + bias

    # 1) Default: weight-resident single-shot path (W DMA'd once, no scratch).
    out = jax.block_until_ready(flatten_head_forward(x, weight, bias))
    assert out.shape == (batch, n_vars, pred_len), out.shape
    assert jnp.allclose(out, ref, atol=1e-4, rtol=1e-4), "mismatch (resident path)"

    # 2) Forced tiled fallback: exercises the multi-step K accumulation path.
    out2 = jax.block_until_ready(
        flatten_head_forward(x, weight, bias, force_tiled=True, tm=8, tn=128, tk=128))
    assert out2.shape == (batch, n_vars, pred_len), out2.shape
    assert jnp.allclose(out2, ref, atol=1e-4, rtol=1e-4), "mismatch (tiled path)"

    # 3) bf16 compute (wrapper-side cast halves weight HBM traffic); f32 accumulate.
    out3 = jax.block_until_ready(
        flatten_head_forward(x, weight, bias, compute_dtype="bfloat16"))
    assert out3.shape == (batch, n_vars, pred_len), out3.shape
    assert jnp.allclose(out3, ref, atol=5e-2, rtol=5e-2), "mismatch (bf16 path)"

    print("KERNEL_OK")
</pallas_src>

<mosaic_0001>
module attributes {stable_mosaic.version = 11 : i64} {
  func.func @_resident_kernel(%arg0: i32, %arg1: memref<8x512xf32, #tpu.memory_space<vmem>>, %arg2: memref<512x128xf32, #tpu.memory_space<vmem>>, %arg3: memref<1x128xf32, #tpu.memory_space<vmem>>, %arg4: memref<8x128xf32, #tpu.memory_space<vmem>>) attributes {dimension_semantics = [#tpu.dimension_semantics<parallel>], iteration_bounds = array<i64: 1>, scalar_prefetch = 0 : i64, scratch_operands = 0 : i64, tpu.core_type = #tpu.core_type<tc>, window_params = [{transform_indices = @transform_0, window_bounds = array<i64: 8, 512>}, {pipeline_mode = #tpu.pipeline_mode<synchronous>, transform_indices = @transform_1, window_bounds = array<i64: 512, 128>}, {pipeline_mode = #tpu.pipeline_mode<synchronous>, transform_indices = @transform_2, window_bounds = array<i64: 1, 128>}, {transform_indices = @transform_3, window_bounds = array<i64: 8, 128>}]} {
    %c0 = arith.constant 0 : index
    %c0_0 = arith.constant 0 : index
    %0 = vector.load %arg1[%c0, %c0_0] : memref<8x512xf32, #tpu.memory_space<vmem>>, vector<8x512xf32>
    %c0_1 = arith.constant 0 : index
    %c0_2 = arith.constant 0 : index
    %1 = vector.load %arg2[%c0_1, %c0_2] : memref<512x128xf32, #tpu.memory_space<vmem>>, vector<512x128xf32>
    %cst = arith.constant dense<0.000000e+00> : vector<8x128xf32>
    %2 = tpu.matmul %0, %1, %cst {dimension_numbers = #tpu.dot_dimension_numbers<[1], [0], [0], [1], [0, 0, 1, 1], [], []>} : vector<8x512xf32>, vector<512x128xf32>, vector<8x128xf32> -> vector<8x128xf32>
    %c0_3 = arith.constant 0 : index
    %c0_4 = arith.constant 0 : index
    %3 = vector.load %arg3[%c0_3, %c0_4] : memref<1x128xf32, #tpu.memory_space<vmem>>, vector<1x128xf32>
    %4 = vector.broadcast %3 : vector<1x128xf32> to vector<8x128xf32>
    %5 = arith.addf %2, %4 : vector<8x128xf32>
    %c0_5 = arith.constant 0 : index
    %c0_6 = arith.constant 0 : index
    %6 = vector.load %arg4[%c0_5, %c0_6] : memref<8x128xf32, #tpu.memory_space<vmem>>, vector<8x128xf32>
    tpu.vector_store %arg4[%c0_5, %c0_6], %5 {strides = array<i32>} : memref<8x128xf32, #tpu.memory_space<vmem>>, vector<8x128xf32>,
    return
  }
  func.func @transform_0(%arg0: i32) -> (i32, i32) {
    %c0_i32 = arith.constant 0 : i32
    %c0_i32_0 = arith.constant 0 : i32
    return %arg0, %c0_i32 : i32, i32
  }
  func.func @transform_1(%arg0: i32) -> (i32, i32) {
    %c0_i32 = arith.constant 0 : i32
    %c0_i32_0 = arith.constant 0 : i32
    %c0_i32_1 = arith.constant 0 : i32
    return %c0_i32, %c0_i32_0 : i32, i32
  }
  func.func @transform_2(%arg0: i32) -> (i32, i32) {
    %c0_i32 = arith.constant 0 : i32
    %c0_i32_0 = arith.constant 0 : i32
    %c0_i32_1 = arith.constant 0 : i32
    return %c0_i32, %c0_i32_0 : i32, i32
  }
  func.func @transform_3(%arg0: i32) -> (i32, i32) {
    %c0_i32 = arith.constant 0 : i32
    %c0_i32_0 = arith.constant 0 : i32
    return %arg0, %c0_i32 : i32, i32
  }
}

</mosaic_0001>

<llo_original>
// kernel: flatten_head_forward.1
$region0: #{flatten_head_forward.1}
  #allocation0 [shape = 'u32[]', space=smem, size = 0x4, offset = 0x4, fixed_abs, tag = 'smem constant byte address 0x4 - core index']
  #allocation1 [shape = 'u32[72,128]{1,0:T(1,128)}', space=vmem, size = 0x9000, scoped, tag = 'internal scratch']
  %s0 = inlined_call_operand.vmem [shape: f32[8,512], index: 0, kind: input, shape index: {}]
  %s1 = inlined_call_operand.vmem [shape: f32[512,128], index: 1, kind: input, shape index: {}]
  %s2 = inlined_call_operand.vmem [shape: f32[1,128], index: 2, kind: input, shape index: {}]
  %s3 = inlined_call_operand.hbm [shape: f32[8,128], index: 3, kind: output, shape index: {}]
  %s4 = sld [smem:[#allocation0]]
  $region22: #{flatten_head_forward.1} parent=0
    _
  %s6 = ssub.s32 1, %s4
  %s7 = scalar_select 0, %s6, %s4
  $region1: #{flatten_head_forward.1} parent=0
    #allocation2 [shape = 'u8[4096]{0}', space=vmem, size = 0x1000, scoped, tag = 'output window, operand 0, single buffered']
    #allocation3 [shape = 's32[1]{0}', space=sflag, size = 0x4, scoped, tag = 'scoped memory for flatten_head_forward.1']
    %8 = vsyncpa [#allocation3], 0
    // Predicated region
    $region2: #{flatten_head_forward.1} parent=1 // pred_check
      _
    $region3: #{flatten_head_forward.1} parent=1 // pred_check_branch
      %10 = sbr.rel (0) target = $region5
    $region4: #{flatten_head_forward.1} parent=1 // pred_region
      _
    $region5: #{flatten_head_forward.1} parent=1 // pred_fallthru
      _
    // Predicated region
    $region6: #{flatten_head_forward.1} parent=1 // pred_check
      _
    $region7: #{flatten_head_forward.1} parent=1 // pred_check_branch
      %12 = sbr.rel (0) target = $region9
    $region8: #{flatten_head_forward.1} parent=1 // pred_region
      _
    $region9: #{flatten_head_forward.1} parent=1 // pred_fallthru
      _
    // Predicated region
    $region10: #{flatten_head_forward.1} parent=1 // pred_check
      _
    $region11: #{flatten_head_forward.1} parent=1 // pred_check_branch
      %14 = sbr.rel (0) target = $region13
    $region12: #{flatten_head_forward.1} parent=1 // pred_region
      _
    $region13: #{flatten_head_forward.1} parent=1 // pred_fallthru
      _
    %v15 = vld [vmem:[%s0] sm:$0xff]
    %v16 = vld [vmem:[%s0 + $0x8] sm:$0xff]
    %v17 = vld [vmem:[%s0 + $0x10] sm:$0xff]
    %v18 = vld [vmem:[%s0 + $0x18] sm:$0xff]
    %v19 = vld [vmem:[%s1] sm:$0xff]
    %v20 = vld [vmem:[%s1 + $0x8] sm:$0xff]
    %v21 = vld [vmem:[%s1 + $0x10] sm:$0xff]
    %v22 = vld [vmem:[%s1 + $0x18] sm:$0xff]
    %v23 = vld [vmem:[%s1 + $0x20] sm:$0xff]
    %v24 = vld [vmem:[%s1 + $0x28] sm:$0xff]
    %v25 = vld [vmem:[%s1 + $0x30] sm:$0xff]
    %v26 = vld [vmem:[%s1 + $0x38] sm:$0xff]
    %v27 = vld [vmem:[%s1 + $0x40] sm:$0xff]
    %v28 = vld [vmem:[%s1 + $0x48] sm:$0xff]
    %v29 = vld [vmem:[%s1 + $0x50] sm:$0xff]
    %v30 = vld [vmem:[%s1 + $0x58] sm:$0xff]
    %v31 = vld [vmem:[%s1 + $0x60] sm:$0xff]
    %v32 = vld [vmem:[%s1 + $0x68] sm:$0xff]
    %v33 = vld [vmem:[%s1 + $0x70] sm:$0xff]
    %v34 = vld [vmem:[%s1 + $0x78] sm:$0xff]
    %v35 = vld [vmem:[%s1 + $0x80] sm:$0xff]
    %v36 = vld [vmem:[%s1 + $0x88] sm:$0xff]
    %v37 = vld [vmem:[%s1 + $0x90] sm:$0xff]
    %v38 = vld [vmem:[%s1 + $0x98] sm:$0xff]
    %v39 = vld [vmem:[%s1 + $0xa0] sm:$0xff]
    %v40 = vld [vmem:[%s1 + $0xa8] sm:$0xff]
    %v41 = vld [vmem:[%s1 + $0xb0] sm:$0xff]
    %v42 = vld [vmem:[%s1 + $0xb8] sm:$0xff]
    %v43 = vld [vmem:[%s1 + $0xc0] sm:$0xff]
    %v44 = vld [vmem:[%s1 + $0xc8] sm:$0xff]
    %v45 = vld [vmem:[%s1 + $0xd0] sm:$0xff]
    %v46 = vld [vmem:[%s1 + $0xd8] sm:$0xff]
    %v47 = vld [vmem:[%s1 + $0xe0] sm:$0xff]
    %v48 = vld [vmem:[%s1 + $0xe8] sm:$0xff]
    %v49 = vld [vmem:[%s1 + $0xf0] sm:$0xff]
    %v50 = vld [vmem:[%s1 + $0xf8] sm:$0xff]
    %v51 = vld [vmem:[%s1 + $0x100] sm:$0xff]
    %v52 = vld [vmem:[%s1 + $0x108] sm:$0xff]
    %v53 = vld [vmem:[%s1 + $0x110] sm:$0xff]
    %v54 = vld [vmem:[%s1 + $0x118] sm:$0xff]
    %v55 = vld [vmem:[%s1 + $0x120] sm:$0xff]
    %v56 = vld [vmem:[%s1 + $0x128] sm:$0xff]
    %v57 = vld [vmem:[%s1 + $0x130] sm:$0xff]
    %v58 = vld [vmem:[%s1 + $0x138] sm:$0xff]
    %v59 = vld [vmem:[%s1 + $0x140] sm:$0xff]
    %v60 = vld [vmem:[%s1 + $0x148] sm:$0xff]
    %v61 = vld [vmem:[%s1 + $0x150] sm:$0xff]
    %v62 = vld [vmem:[%s1 + $0x158] sm:$0xff]
    %v63 = vld [vmem:[%s1 + $0x160] sm:$0xff]
    %v64 = vld [vmem:[%s1 + $0x168] sm:$0xff]
    %v65 = vld [vmem:[%s1 + $0x170] sm:$0xff]
    %v66 = vld [vmem:[%s1 + $0x178] sm:$0xff]
    %v67 = vld [vmem:[%s1 + $0x180] sm:$0xff]
    %v68 = vld [vmem:[%s1 + $0x188] sm:$0xff]
    %v69 = vld [vmem:[%s1 + $0x190] sm:$0xff]
    %v70 = vld [vmem:[%s1 + $0x198] sm:$0xff]
    %v71 = vld [vmem:[%s1 + $0x1a0] sm:$0xff]
    %v72 = vld [vmem:[%s1 + $0x1a8] sm:$0xff]
    %v73 = vld [vmem:[%s1 + $0x1b0] sm:$0xff]
    %v74 = vld [vmem:[%s1 + $0x1b8] sm:$0xff]
    %v75 = vld [vmem:[%s1 + $0x1c0] sm:$0xff]
    %v76 = vld [vmem:[%s1 + $0x1c8] sm:$0xff]
    %v77 = vld [vmem:[%s1 + $0x1d0] sm:$0xff]
    %v78 = vld [vmem:[%s1 + $0x1d8] sm:$0xff]
    %v79 = vld [vmem:[%s1 + $0x1e0] sm:$0xff]
    %v80 = vld [vmem:[%s1 + $0x1e8] sm:$0xff]
    %v81 = vld [vmem:[%s1 + $0x1f0] sm:$0xff]
    %v82 = vld [vmem:[%s1 + $0x1f8] sm:$0xff]
    %v83 = vld [vmem:[%s2] sm:$0x1]
    %v85 = vperm.slane %v83, 0
    %87 = vmatpush.msra.mxu0 %v34
    %88 = vmatpush.msra.mxu0 %v33
    %89 = vmatpush.msra.mxu0 %v32
    %90 = vmatpush.msra.mxu0 %v31
    %91 = vmatpush.msra.mxu0 %v30
    %92 = vmatpush.msra.mxu0 %v29
    %93 = vmatpush.msra.mxu0 %v28
    %94 = vmatpush.msra.mxu0 %v27
    %95 = vmatpush.msra.mxu0 %v26
    %96 = vmatpush.msra.mxu0 %v25
    %97 = vmatpush.msra.mxu0 %v24
    %98 = vmatpush.msra.mxu0 %v23
    %99 = vmatpush.msra.mxu0 %v22
    %100 = vmatpush.msra.mxu0 %v21
    %101 = vmatpush.msra.mxu0 %v20
    %102 = vmatpush.msra.mxu0 %v19
    %103 = vmatmul.f32.gmra.mxu0 %v15
    %v104 = vpop.f32.mrf.mxu0
    %v105 = vadd.f32 %v85, %v104
    %106 = vdwg.mxu0
    %107 = vmatpush.msra.mxu0 %v50
    %108 = vmatpush.msra.mxu0 %v49
    %109 = vmatpush.msra.mxu0 %v48
    %110 = vmatpush.msra.mxu0 %v47
    %111 = vmatpush.msra.mxu0 %v46
    %112 = vmatpush.msra.mxu0 %v45
    %113 = vmatpush.msra.mxu0 %v44
    %114 = vmatpush.msra.mxu0 %v43
    %115 = vmatpush.msra.mxu0 %v42
    %116 = vmatpush.msra.mxu0 %v41
    %117 = vmatpush.msra.mxu0 %v40
    %118 = vmatpush.msra.mxu0 %v39
    %119 = vmatpush.msra.mxu0 %v38
    %120 = vmatpush.msra.mxu0 %v37
    %121 = vmatpush.msra.mxu0 %v36
    %122 = vmatpush.msra.mxu0 %v35
    %123 = vmatmul.f32.gmra.mxu0 %v16
    %v124 = vpop.f32.mrf.mxu0
    %v125 = vadd.f32 %v105, %v124
    %126 = vdwg.mxu0
    %127 = vmatpush.msra.mxu0 %v66
    %128 = vmatpush.msra.mxu0 %v65
    %129 = vmatpush.msra.mxu0 %v64
    %130 = vmatpush.msra.mxu0 %v63
    %131 = vmatpush.msra.mxu0 %v62
    %132 = vmatpush.msra.mxu0 %v61
    %133 = vmatpush.msra.mxu0 %v60
    %134 = vmatpush.msra.mxu0 %v59
    %135 = vmatpush.msra.mxu0 %v58
    %136 = vmatpush.msra.mxu0 %v57
    %137 = vmatpush.msra.mxu0 %v56
    %138 = vmatpush.msra.mxu0 %v55
    %139 = vmatpush.msra.mxu0 %v54
    %140 = vmatpush.msra.mxu0 %v53
    %141 = vmatpush.msra.mxu0 %v52
    %142 = vmatpush.msra.mxu0 %v51
    %143 = vmatmul.f32.gmra.mxu0 %v17
    %v144 = vpop.f32.mrf.mxu0
    %v145 = vadd.f32 %v125, %v144
    %146 = vdwg.mxu0
    %147 = vmatpush.msra.mxu0 %v82
    %148 = vmatpush.msra.mxu0 %v81
    %149 = vmatpush.msra.mxu0 %v80
    %150 = vmatpush.msra.mxu0 %v79
    %151 = vmatpush.msra.mxu0 %v78
    %152 = vmatpush.msra.mxu0 %v77
    %153 = vmatpush.msra.mxu0 %v76
    %154 = vmatpush.msra.mxu0 %v75
    %155 = vmatpush.msra.mxu0 %v74
    %156 = vmatpush.msra.mxu0 %v73
    %157 = vmatpush.msra.mxu0 %v72
    %158 = vmatpush.msra.mxu0 %v71
    %159 = vmatpush.msra.mxu0 %v70
    %160 = vmatpush.msra.mxu0 %v69
    %161 = vmatpush.msra.mxu0 %v68
    %162 = vmatpush.msra.mxu0 %v67
    %163 = vmatmul.f32.gmra.mxu0 %v18
    %v164 = vpop.f32.mrf.mxu0
    %v165 = vadd.f32 %v145, %v164
    %166 = vdwg.mxu0
    %167 = vst [vmem:[#allocation2] sm:$0xff] %v165
    // Predicated region
    $region14: #{flatten_head_forward.1} parent=1 // pred_check
      _
    $region15: #{flatten_head_forward.1} parent=1 // pred_check_branch
      %169 = sbr.rel (0) target = $region17
    $region16: #{flatten_head_forward.1} parent=1 // pred_region
      %171 = vsyncadd [#allocation3], 0
      %s173 = sshll.u32 [#allocation2], 4
      %s174 = int_to_ptr.vmem [resolvable:$true] %s173
      %s175 = sshll.u32 %s3, 4
      %s176 = int_to_ptr.hbm [resolvable:$true] %s175
      %178 = dma.vmem_to_hbm [thread:$0]  %s174, 128, %s176, [#allocation3]
    $region17: #{flatten_head_forward.1} parent=1 // pred_fallthru
      _
    // Predicated region
    $region18: #{flatten_head_forward.1} parent=1 // pred_check
      _
    $region19: #{flatten_head_forward.1} parent=1 // pred_check_branch
      %180 = sbr.rel (0) target = $region21
    $region20: #{flatten_head_forward.1} parent=1 // pred_region
      %182 = dma.done [#allocation3], 128
    $region21: #{flatten_head_forward.1} parent=1 // pred_fallthru
      _
    %183 = vsyncpa [#allocation3], 1

</llo_original>
